<compile_context>
chip_gen: v5e
topology: v5e:2x2
jax: 0.10.0
libtpu: 0.0.40
codegen_flags: <defaults>
</compile_context>

<pallas_src>
import functools

import jax
import jax.numpy as jnp
from jax import lax
from jax.experimental import pallas as pl
from jax.experimental.pallas import tpu as pltpu


def _bottleneck_kernel(x_ref, w1_ref, b1_ref, w2_ref, b2_ref, w3_ref, b3_ref,
                       out_ref, pad_ref, *, B, H, W, Cin, P):
    # x_ref block: (B, H, W*Cin) — lane-dense load; merge leading dims only.
    M = B * H
    WP = W * P
    WC = W * Cin
    PADW = (W + 2) * P

    # --- conv1 (1x1, BN scale folded into weight columns) + bias + relu -------
    x_bf = x_ref[...].reshape(M, WC).astype(jnp.bfloat16)
    h1 = jnp.dot(x_bf, w1_ref[...], preferred_element_type=jnp.float32)
    h1 = jnp.maximum(h1 + b1_ref[...], 0.0)                      # (M, W*P) f32

    # --- padded activation in persistent lane-dense VMEM scratch --------------
    # Zero only the 1-pixel halo strips (O(perimeter)); the interior is fully
    # overwritten below.  Done every step (safe under megacore sharding).
    pad_ref[:, 0:1, :] = jnp.zeros((B, 1, PADW), jnp.float32)
    pad_ref[:, H + 1:H + 2, :] = jnp.zeros((B, 1, PADW), jnp.float32)
    pad_ref[:, :, 0:P] = jnp.zeros((B, H + 2, P), jnp.float32)
    pad_ref[:, :, (W + 1) * P:(W + 2) * P] = jnp.zeros((B, H + 2, P), jnp.float32)
    # Single lane-dense interior store (W*P contiguous lanes per row).
    pad_ref[:, 1:H + 1, P:(W + 1) * P] = h1.reshape(B, H, WP)

    # --- conv2 (3x3, stride=1, dilation=1) -------------------------------------
    # Three accumulating matmuls, one per row offset dy; the dx / cin mixing is
    # encoded in the block-Toeplitz weight, so the LHS is just a lane-dense
    # row-slab of the padded scratch (no taps slab, no concat, no relayout).
    acc = jnp.zeros((M, WP), jnp.float32)
    for dy in range(3):                                   # static, unrolled
        lhs = pad_ref[:, dy:dy + H, :].reshape(M, PADW).astype(jnp.bfloat16)
        acc = acc + jnp.dot(lhs, w2_ref[dy], preferred_element_type=jnp.float32)
    h2 = jnp.maximum(acc + b2_ref[...], 0.0)                     # (M, W*P) f32

    # --- conv3 (1x1) + bias, identity residual, relu — already in output layout
    h3 = jnp.dot(h2.astype(jnp.bfloat16), w3_ref[...],
                 preferred_element_type=jnp.float32)             # (M, W*Cin)
    out = jnp.maximum(h3 + b3_ref[...] + x_ref[...].reshape(M, WC), 0.0)
    out_ref[...] = out.reshape(B, H, WC)


def bottleneck_pallas(x_nhwc, w1, s1, b1, w2, s2, b2, w3, s3, b3, *, block_b=1):
    """x_nhwc: (N, H, W, Cin) float32.
    w1:(Cin,P)  w2:(3,3,P,P) HWIO  w3:(P,4P);  s*/b* are (1, C) folded BN scale/bias."""
    N, H, W, Cin = x_nhwc.shape
    P = w1.shape[1]
    assert Cin == 4 * P, "identity residual requires inplanes == 4 * planes"
    assert w2.shape == (3, 3, P, P)
    assert N % block_b == 0
    # For v7x keep N // block_b >= 2 so the parallel batch axis uses both TCs;
    # for DMA/compute overlap prefer >= 4 grid steps per core at production N.

    f32 = jnp.float32
    # Fold BN scale into the conv weight output-columns IN F32, then cast to bf16
    # (avoids double rounding).  Only tiled biases remain in the kernel epilogue.
    w1s = w1.astype(f32) * s1.reshape(1, P).astype(f32)
    w2s = w2.astype(f32) * s2.reshape(1, 1, 1, P).astype(f32)
    w3s = w3.astype(f32) * s3.reshape(1, Cin).astype(f32)

    # Block-diagonal weights for the 1x1 convs (per-pixel channel mixing in the
    # lane-dense (.., W*C) layout):  kron(I_W, w)[w'*Ci+ci, w*Co+co] = [w'==w]*w[ci,co]
    eyeW = jnp.eye(W, dtype=f32)
    W1big = jnp.kron(eyeW, w1s).astype(jnp.bfloat16)             # (W*Cin, W*P)
    W3big = jnp.kron(eyeW, w3s).astype(jnp.bfloat16)             # (W*P,  W*Cin)

    # Block-Toeplitz weights for the 3x3 conv, one slab per row offset dy:
    #   W2big[dy][(w+dx)*P+ci, w*P+co] = w2[dy, dx, ci, co]
    shift = [jnp.zeros((W + 2, W), f32).at[jnp.arange(W) + dx, jnp.arange(W)].set(1.0)
             for dx in range(3)]
    W2big = jnp.stack(
        [sum(jnp.kron(shift[dx], w2s[dy, dx]) for dx in range(3)) for dy in range(3)]
    ).astype(jnp.bfloat16)                                       # (3, (W+2)*P, W*P)

    # Biases pre-tiled to the lane-dense widths.
    b1t = jnp.tile(b1.reshape(P), W).reshape(1, W * P).astype(f32)
    b2t = jnp.tile(b2.reshape(P), W).reshape(1, W * P).astype(f32)
    b3t = jnp.tile(b3.reshape(Cin), W).reshape(1, W * Cin).astype(f32)
    params = (W1big, b1t, W2big, b2t, W3big, b3t)

    # Lane-dense presentation of activations: last dim = W*Cin (multiple of 128
    # in this config) so the per-step DMA loads/stores are unmasked.
    x2d = x_nhwc.reshape(N, H, W * Cin)

    def full_spec(arr):
        return pl.BlockSpec(arr.shape, lambda n, _nd=arr.ndim: (0,) * _nd)

    kernel = functools.partial(_bottleneck_kernel,
                               B=block_b, H=H, W=W, Cin=Cin, P=P)

    # Explicit VMEM budget (double-buffered in/out blocks + weights + pad scratch),
    # with headroom, capped well below v7x's 64 MiB/TC.
    blk_bytes = block_b * H * W * Cin * 4
    w_bytes = sum(int(p.size) * p.dtype.itemsize for p in params)
    pad_bytes = block_b * (H + 2) * (W + 2) * P * 4
    vmem_limit = min(max(4 * (4 * blk_bytes + 2 * w_bytes + pad_bytes), 8 << 20), 48 << 20)

    out2d = pl.pallas_call(
        kernel,
        out_shape=jax.ShapeDtypeStruct((N, H, W * Cin), jnp.float32),
        grid_spec=pltpu.PrefetchScalarGridSpec(
            num_scalar_prefetch=0,
            grid=(N // block_b,),
            in_specs=[pl.BlockSpec((block_b, H, W * Cin), lambda n: (n, 0, 0))]
                     + [full_spec(p) for p in params],
            out_specs=pl.BlockSpec((block_b, H, W * Cin), lambda n: (n, 0, 0)),
            scratch_shapes=[pltpu.VMEM((block_b, H + 2, (W + 2) * P), jnp.float32)],
        ),
        compiler_params=pltpu.CompilerParams(
            dimension_semantics=("parallel",),
            vmem_limit_bytes=vmem_limit),
    )(x2d, *params)
    return out2d.reshape(N, H, W, Cin)


# ----------------------------- pure-JAX reference -----------------------------
def bottleneck_ref(x_nhwc, w1_oihw, w2_oihw, w3_oihw, bn1, bn2, bn3, eps=1e-5):
    def conv(h, w_oihw, pad):
        w_hwio = jnp.transpose(w_oihw, (2, 3, 1, 0))
        return lax.conv_general_dilated(
            h, w_hwio, window_strides=(1, 1), padding=pad,
            dimension_numbers=("NHWC", "HWIO", "NHWC"))

    def bn(h, p):
        gamma, beta, mean, var = p
        return (h - mean) * gamma / jnp.sqrt(var + eps) + beta

    h = jax.nn.relu(bn(conv(x_nhwc, w1_oihw, "VALID"), bn1))
    h = jax.nn.relu(bn(conv(h, w2_oihw, [(1, 1), (1, 1)]), bn2))
    h = bn(conv(h, w3_oihw, "VALID"), bn3)
    return jax.nn.relu(h + x_nhwc)


if __name__ == "__main__":
    # Small shapes consistent with the module: planes=4, inplanes=4*planes=16.
    N, H, W = 2, 16, 16
    planes = 4
    inplanes = planes * 4
    eps = 1e-5

    key = jax.random.PRNGKey(0)
    ks = jax.random.split(key, 16)

    x_nchw = jax.random.normal(ks[0], (N, inplanes, H, W), jnp.float32)
    x_nhwc = jnp.transpose(x_nchw, (0, 2, 3, 1))

    # Conv weights in the nn.Conv2d (OIHW) shapes, deterministic init.
    w1_oihw = 0.2 * jax.random.normal(ks[1], (planes, inplanes, 1, 1), jnp.float32)
    w2_oihw = 0.2 * jax.random.normal(ks[2], (planes, planes, 3, 3), jnp.float32)
    w3_oihw = 0.2 * jax.random.normal(ks[3], (planes * 4, planes, 1, 1), jnp.float32)

    def make_bn(kg, kb, km, kv, c):
        gamma = 1.0 + 0.1 * jax.random.normal(kg, (c,), jnp.float32)
        beta = 0.1 * jax.random.normal(kb, (c,), jnp.float32)
        mean = 0.1 * jax.random.normal(km, (c,), jnp.float32)
        var = jax.random.uniform(kv, (c,), jnp.float32, 0.5, 1.5)
        return gamma, beta, mean, var

    bn1 = make_bn(ks[4], ks[5], ks[6], ks[7], planes)
    bn2 = make_bn(ks[8], ks[9], ks[10], ks[11], planes)
    bn3 = make_bn(ks[12], ks[13], ks[14], ks[15], planes * 4)

    # Glue: convert conv weights to matmul form, fold BN into scale/bias.
    w1 = jnp.transpose(w1_oihw[:, :, 0, 0], (1, 0))          # (Cin, P)
    w2 = jnp.transpose(w2_oihw, (2, 3, 1, 0))                # (3, 3, P, P)  (HWIO)
    w3 = jnp.transpose(w3_oihw[:, :, 0, 0], (1, 0))          # (P, 4P)

    def fold(p):
        gamma, beta, mean, var = p
        s = gamma / jnp.sqrt(var + eps)
        b = beta - mean * s
        return s[None, :], b[None, :]

    s1, b1 = fold(bn1)
    s2, b2 = fold(bn2)
    s3, b3 = fold(bn3)

    out = bottleneck_pallas(x_nhwc, w1, s1, b1, w2, s2, b2, w3, s3, b3, block_b=1)
    out = jax.block_until_ready(out)

    ref = bottleneck_ref(x_nhwc, w1_oihw, w2_oihw, w3_oihw, bn1, bn2, bn3, eps)
    ref = jax.block_until_ready(ref)

    import numpy as np
    # bf16 MXU operands -> looser tolerance than a pure-f32 version.
    np.testing.assert_allclose(np.asarray(out), np.asarray(ref),
                               rtol=5e-2, atol=5e-2)
    print("KERNEL_OK")
</pallas_src>

<mosaic_0001>
module attributes {stable_mosaic.version = 11 : i64} {
  func.func @_bottleneck_kernel(%arg0: i32, %arg1: memref<1x16x256xf32, #tpu.memory_space<vmem>>, %arg2: memref<256x64xbf16, #tpu.memory_space<vmem>>, %arg3: memref<1x64xf32, #tpu.memory_space<vmem>>, %arg4: memref<3x72x64xbf16, #tpu.memory_space<vmem>>, %arg5: memref<1x64xf32, #tpu.memory_space<vmem>>, %arg6: memref<64x256xbf16, #tpu.memory_space<vmem>>, %arg7: memref<1x256xf32, #tpu.memory_space<vmem>>, %arg8: memref<1x16x256xf32, #tpu.memory_space<vmem>>, %arg9: memref<1x18x72xf32, #tpu.memory_space<vmem>>) attributes {dimension_semantics = [#tpu.dimension_semantics<parallel>], iteration_bounds = array<i64: 2>, scalar_prefetch = 0 : i64, scratch_operands = 1 : i64, tpu.core_type = #tpu.core_type<tc>, window_params = [{transform_indices = @transform_0, window_bounds = array<i64: 1, 16, 256>}, {pipeline_mode = #tpu.pipeline_mode<synchronous>, transform_indices = @transform_1, window_bounds = array<i64: 256, 64>}, {pipeline_mode = #tpu.pipeline_mode<synchronous>, transform_indices = @transform_2, window_bounds = array<i64: 1, 64>}, {pipeline_mode = #tpu.pipeline_mode<synchronous>, transform_indices = @transform_3, window_bounds = array<i64: 3, 72, 64>}, {pipeline_mode = #tpu.pipeline_mode<synchronous>, transform_indices = @transform_4, window_bounds = array<i64: 1, 64>}, {pipeline_mode = #tpu.pipeline_mode<synchronous>, transform_indices = @transform_5, window_bounds = array<i64: 64, 256>}, {pipeline_mode = #tpu.pipeline_mode<synchronous>, transform_indices = @transform_6, window_bounds = array<i64: 1, 256>}, {transform_indices = @transform_7, window_bounds = array<i64: 1, 16, 256>}]} {
    %c0 = arith.constant 0 : index
    %c0_0 = arith.constant 0 : index
    %c0_1 = arith.constant 0 : index
    %0 = vector.load %arg1[%c0, %c0_0, %c0_1] : memref<1x16x256xf32, #tpu.memory_space<vmem>>, vector<1x16x256xf32>
    %1 = vector.shape_cast %0 : vector<1x16x256xf32> to vector<16x256xf32>
    %2 = arith.truncf %1 : vector<16x256xf32> to vector<16x256xbf16>
    %c0_2 = arith.constant 0 : index
    %c0_3 = arith.constant 0 : index
    %3 = vector.load %arg2[%c0_2, %c0_3] : memref<256x64xbf16, #tpu.memory_space<vmem>>, vector<256x64xbf16>
    %cst = arith.constant dense<0.000000e+00> : vector<16x64xf32>
    %4 = tpu.matmul %2, %3, %cst {dimension_numbers = #tpu.dot_dimension_numbers<[1], [0], [0], [1], [0, 0, 1, 1], [], []>} : vector<16x256xbf16>, vector<256x64xbf16>, vector<16x64xf32> -> vector<16x64xf32>
    %c0_4 = arith.constant 0 : index
    %c0_5 = arith.constant 0 : index
    %5 = vector.load %arg3[%c0_4, %c0_5] : memref<1x64xf32, #tpu.memory_space<vmem>>, vector<1x64xf32>
    %6 = vector.broadcast %5 : vector<1x64xf32> to vector<16x64xf32>
    %7 = arith.addf %4, %6 : vector<16x64xf32>
    %cst_6 = arith.constant 0.000000e+00 : f32
    %8 = vector.broadcast %cst_6 : f32 to vector<16x64xf32>
    %9 = arith.maximumf %7, %8 : vector<16x64xf32>
    %cst_7 = arith.constant 0.000000e+00 : f32
    %10 = vector.broadcast %cst_7 : f32 to vector<1x1x72xf32>
    %c0_8 = arith.constant 0 : index
    %c0_9 = arith.constant 0 : index
    %c0_10 = arith.constant 0 : index
    %11 = vector.load %arg9[%c0_8, %c0_9, %c0_10] : memref<1x18x72xf32, #tpu.memory_space<vmem>>, vector<1x1x72xf32>
    tpu.vector_store %arg9[%c0_8, %c0_9, %c0_10], %10 {strides = array<i32>} : memref<1x18x72xf32, #tpu.memory_space<vmem>>, vector<1x1x72xf32>,
    %cst_11 = arith.constant 0.000000e+00 : f32
    %12 = vector.broadcast %cst_11 : f32 to vector<1x1x72xf32>
    %c0_12 = arith.constant 0 : index
    %c17 = arith.constant 17 : index
    %c0_13 = arith.constant 0 : index
    %13 = vector.load %arg9[%c0_12, %c17, %c0_13] : memref<1x18x72xf32, #tpu.memory_space<vmem>>, vector<1x1x72xf32>
    tpu.vector_store %arg9[%c0_12, %c17, %c0_13], %12 {strides = array<i32>} : memref<1x18x72xf32, #tpu.memory_space<vmem>>, vector<1x1x72xf32>,
    %cst_14 = arith.constant 0.000000e+00 : f32
    %14 = vector.broadcast %cst_14 : f32 to vector<1x18x4xf32>
    %c0_15 = arith.constant 0 : index
    %c0_16 = arith.constant 0 : index
    %c0_17 = arith.constant 0 : index
    %15 = vector.load %arg9[%c0_15, %c0_16, %c0_17] : memref<1x18x72xf32, #tpu.memory_space<vmem>>, vector<1x18x4xf32>
    tpu.vector_store %arg9[%c0_15, %c0_16, %c0_17], %14 {strides = array<i32>} : memref<1x18x72xf32, #tpu.memory_space<vmem>>, vector<1x18x4xf32>,
    %cst_18 = arith.constant 0.000000e+00 : f32
    %16 = vector.broadcast %cst_18 : f32 to vector<1x18x4xf32>
    %c0_19 = arith.constant 0 : index
    %c0_20 = arith.constant 0 : index
    %c68 = arith.constant 68 : index
    %17 = vector.load %arg9[%c0_19, %c0_20, %c68] : memref<1x18x72xf32, #tpu.memory_space<vmem>>, vector<1x18x4xf32>
    tpu.vector_store %arg9[%c0_19, %c0_20, %c68], %16 {strides = array<i32>} : memref<1x18x72xf32, #tpu.memory_space<vmem>>, vector<1x18x4xf32>,
    %18 = vector.shape_cast %9 : vector<16x64xf32> to vector<1x16x64xf32>
    %c0_21 = arith.constant 0 : index
    %c1 = arith.constant 1 : index
    %c4 = arith.constant 4 : index
    %19 = vector.load %arg9[%c0_21, %c1, %c4] : memref<1x18x72xf32, #tpu.memory_space<vmem>>, vector<1x16x64xf32>
    tpu.vector_store %arg9[%c0_21, %c1, %c4], %18 {strides = array<i32>} : memref<1x18x72xf32, #tpu.memory_space<vmem>>, vector<1x16x64xf32>,
    %cst_22 = arith.constant 0.000000e+00 : f32
    %20 = vector.broadcast %cst_22 : f32 to vector<16x64xf32>
    %c0_23 = arith.constant 0 : index
    %c0_24 = arith.constant 0 : index
    %c0_25 = arith.constant 0 : index
    %21 = vector.load %arg9[%c0_23, %c0_24, %c0_25] : memref<1x18x72xf32, #tpu.memory_space<vmem>>, vector<1x16x72xf32>
    %22 = vector.shape_cast %21 : vector<1x16x72xf32> to vector<16x72xf32>
    %23 = arith.truncf %22 : vector<16x72xf32> to vector<16x72xbf16>
    %c0_26 = arith.constant 0 : index
    %c0_27 = arith.constant 0 : index
    %c0_28 = arith.constant 0 : index
    %24 = vector.load %arg4[%c0_26, %c0_27, %c0_28] : memref<3x72x64xbf16, #tpu.memory_space<vmem>>, vector<1x72x64xbf16>
    %25 = vector.shape_cast %24 : vector<1x72x64xbf16> to vector<72x64xbf16>
    %cst_29 = arith.constant dense<0.000000e+00> : vector<16x64xf32>
    %26 = tpu.matmul %23, %25, %cst_29 {dimension_numbers = #tpu.dot_dimension_numbers<[1], [0], [0], [1], [0, 0, 1, 1], [], []>} : vector<16x72xbf16>, vector<72x64xbf16>, vector<16x64xf32> -> vector<16x64xf32>
    %27 = arith.addf %20, %26 : vector<16x64xf32>
    %c0_30 = arith.constant 0 : index
    %c1_31 = arith.constant 1 : index
    %c0_32 = arith.constant 0 : index
    %28 = vector.load %arg9[%c0_30, %c1_31, %c0_32] : memref<1x18x72xf32, #tpu.memory_space<vmem>>, vector<1x16x72xf32>
    %29 = vector.shape_cast %28 : vector<1x16x72xf32> to vector<16x72xf32>
    %30 = arith.truncf %29 : vector<16x72xf32> to vector<16x72xbf16>
    %c1_33 = arith.constant 1 : index
    %c0_34 = arith.constant 0 : index
    %c0_35 = arith.constant 0 : index
    %31 = vector.load %arg4[%c1_33, %c0_34, %c0_35] : memref<3x72x64xbf16, #tpu.memory_space<vmem>>, vector<1x72x64xbf16>
    %32 = vector.shape_cast %31 : vector<1x72x64xbf16> to vector<72x64xbf16>
    %cst_36 = arith.constant dense<0.000000e+00> : vector<16x64xf32>
    %33 = tpu.matmul %30, %32, %cst_36 {dimension_numbers = #tpu.dot_dimension_numbers<[1], [0], [0], [1], [0, 0, 1, 1], [], []>} : vector<16x72xbf16>, vector<72x64xbf16>, vector<16x64xf32> -> vector<16x64xf32>
    %34 = arith.addf %27, %33 : vector<16x64xf32>
    %c0_37 = arith.constant 0 : index
    %c2 = arith.constant 2 : index
    %c0_38 = arith.constant 0 : index
    %35 = vector.load %arg9[%c0_37, %c2, %c0_38] : memref<1x18x72xf32, #tpu.memory_space<vmem>>, vector<1x16x72xf32>
    %36 = vector.shape_cast %35 : vector<1x16x72xf32> to vector<16x72xf32>
    %37 = arith.truncf %36 : vector<16x72xf32> to vector<16x72xbf16>
    %c2_39 = arith.constant 2 : index
    %c0_40 = arith.constant 0 : index
    %c0_41 = arith.constant 0 : index
    %38 = vector.load %arg4[%c2_39, %c0_40, %c0_41] : memref<3x72x64xbf16, #tpu.memory_space<vmem>>, vector<1x72x64xbf16>
    %39 = vector.shape_cast %38 : vector<1x72x64xbf16> to vector<72x64xbf16>
    %cst_42 = arith.constant dense<0.000000e+00> : vector<16x64xf32>
    %40 = tpu.matmul %37, %39, %cst_42 {dimension_numbers = #tpu.dot_dimension_numbers<[1], [0], [0], [1], [0, 0, 1, 1], [], []>} : vector<16x72xbf16>, vector<72x64xbf16>, vector<16x64xf32> -> vector<16x64xf32>
    %41 = arith.addf %34, %40 : vector<16x64xf32>
    %c0_43 = arith.constant 0 : index
    %c0_44 = arith.constant 0 : index
    %42 = vector.load %arg5[%c0_43, %c0_44] : memref<1x64xf32, #tpu.memory_space<vmem>>, vector<1x64xf32>
    %43 = vector.broadcast %42 : vector<1x64xf32> to vector<16x64xf32>
    %44 = arith.addf %41, %43 : vector<16x64xf32>
    %cst_45 = arith.constant 0.000000e+00 : f32
    %45 = vector.broadcast %cst_45 : f32 to vector<16x64xf32>
    %46 = arith.maximumf %44, %45 : vector<16x64xf32>
    %47 = arith.truncf %46 : vector<16x64xf32> to vector<16x64xbf16>
    %c0_46 = arith.constant 0 : index
    %c0_47 = arith.constant 0 : index
    %48 = vector.load %arg6[%c0_46, %c0_47] : memref<64x256xbf16, #tpu.memory_space<vmem>>, vector<64x256xbf16>
    %cst_48 = arith.constant dense<0.000000e+00> : vector<16x256xf32>
    %49 = tpu.matmul %47, %48, %cst_48 {dimension_numbers = #tpu.dot_dimension_numbers<[1], [0], [0], [1], [0, 0, 1, 1], [], []>} : vector<16x64xbf16>, vector<64x256xbf16>, vector<16x256xf32> -> vector<16x256xf32>
    %c0_49 = arith.constant 0 : index
    %c0_50 = arith.constant 0 : index
    %50 = vector.load %arg7[%c0_49, %c0_50] : memref<1x256xf32, #tpu.memory_space<vmem>>, vector<1x256xf32>
    %51 = vector.broadcast %50 : vector<1x256xf32> to vector<16x256xf32>
    %52 = arith.addf %49, %51 : vector<16x256xf32>
    %c0_51 = arith.constant 0 : index
    %c0_52 = arith.constant 0 : index
    %c0_53 = arith.constant 0 : index
    %53 = vector.load %arg1[%c0_51, %c0_52, %c0_53] : memref<1x16x256xf32, #tpu.memory_space<vmem>>, vector<1x16x256xf32>
    %54 = vector.shape_cast %53 : vector<1x16x256xf32> to vector<16x256xf32>
    %55 = arith.addf %52, %54 : vector<16x256xf32>
    %cst_54 = arith.constant 0.000000e+00 : f32
    %56 = vector.broadcast %cst_54 : f32 to vector<16x256xf32>
    %57 = arith.maximumf %55, %56 : vector<16x256xf32>
    %58 = vector.shape_cast %57 : vector<16x256xf32> to vector<1x16x256xf32>
    %c0_55 = arith.constant 0 : index
    %c0_56 = arith.constant 0 : index
    %c0_57 = arith.constant 0 : index
    %59 = vector.load %arg8[%c0_55, %c0_56, %c0_57] : memref<1x16x256xf32, #tpu.memory_space<vmem>>, vector<1x16x256xf32>
    tpu.vector_store %arg8[%c0_55, %c0_56, %c0_57], %58 {strides = array<i32>} : memref<1x16x256xf32, #tpu.memory_space<vmem>>, vector<1x16x256xf32>,
    return
  }
  func.func @transform_0(%arg0: i32) -> (i32, i32, i32) {
    %c0_i32 = arith.constant 0 : i32
    %c0_i32_0 = arith.constant 0 : i32
    %c0_i32_1 = arith.constant 0 : i32
    return %arg0, %c0_i32, %c0_i32_0 : i32, i32, i32
  }
  func.func @transform_1(%arg0: i32) -> (i32, i32) {
    %c0_i32 = arith.constant 0 : i32
    %c0_i32_0 = arith.constant 0 : i32
    %c0_i32_1 = arith.constant 0 : i32
    return %c0_i32, %c0_i32_0 : i32, i32
  }
  func.func @transform_2(%arg0: i32) -> (i32, i32) {
    %c0_i32 = arith.constant 0 : i32
    %c0_i32_0 = arith.constant 0 : i32
    %c0_i32_1 = arith.constant 0 : i32
    return %c0_i32, %c0_i32_0 : i32, i32
  }
  func.func @transform_3(%arg0: i32) -> (i32, i32, i32) {
    %c0_i32 = arith.constant 0 : i32
    %c0_i32_0 = arith.constant 0 : i32
    %c0_i32_1 = arith.constant 0 : i32
    %c0_i32_2 = arith.constant 0 : i32
    return %c0_i32, %c0_i32_0, %c0_i32_1 : i32, i32, i32
  }
  func.func @transform_4(%arg0: i32) -> (i32, i32) {
    %c0_i32 = arith.constant 0 : i32
    %c0_i32_0 = arith.constant 0 : i32
    %c0_i32_1 = arith.constant 0 : i32
    return %c0_i32, %c0_i32_0 : i32, i32
  }
  func.func @transform_5(%arg0: i32) -> (i32, i32) {
    %c0_i32 = arith.constant 0 : i32
    %c0_i32_0 = arith.constant 0 : i32
    %c0_i32_1 = arith.constant 0 : i32
    return %c0_i32, %c0_i32_0 : i32, i32
  }
  func.func @transform_6(%arg0: i32) -> (i32, i32) {
    %c0_i32 = arith.constant 0 : i32
    %c0_i32_0 = arith.constant 0 : i32
    %c0_i32_1 = arith.constant 0 : i32
    return %c0_i32, %c0_i32_0 : i32, i32
  }
  func.func @transform_7(%arg0: i32) -> (i32, i32, i32) {
    %c0_i32 = arith.constant 0 : i32
    %c0_i32_0 = arith.constant 0 : i32
    %c0_i32_1 = arith.constant 0 : i32
    return %arg0, %c0_i32, %c0_i32_0 : i32, i32, i32
  }
}

</mosaic_0001>

<llo_original>
// kernel: tpu_custom_call.1
$region0: #{tpu_custom_call.1}
  #allocation0 [shape = 'u32[]', space=smem, size = 0x4, offset = 0x4, fixed_abs, tag = 'smem constant byte address 0x4 - core index']
  #allocation1 [shape = 'u32[72,128]{1,0:T(1,128)}', space=vmem, size = 0x9000, scoped, tag = 'internal scratch']
  #allocation2 [shape = 'f32[1,18,72]{2,1,0:T(8,128)}', space=vmem, size = 0x3000, scoped, tag = 'scratch operand']
  %s0 = inlined_call_operand.vmem [shape: f32[2,16,256], index: 0, kind: input, shape index: {}]
  %s1 = inlined_call_operand.vmem [shape: bf16[256,64], index: 1, kind: input, shape index: {}]
  %s2 = inlined_call_operand.vmem [shape: f32[1,64], index: 2, kind: input, shape index: {}]
  %s3 = inlined_call_operand.vmem [shape: bf16[3,72,64], index: 3, kind: input, shape index: {}]
  %s4 = inlined_call_operand.vmem [shape: f32[1,64], index: 4, kind: input, shape index: {}]
  %s5 = inlined_call_operand.vmem [shape: bf16[64,256], index: 5, kind: input, shape index: {}]
  %s6 = inlined_call_operand.vmem [shape: f32[1,256], index: 6, kind: input, shape index: {}]
  %s7 = inlined_call_operand.hbm [shape: f32[2,16,256], index: 7, kind: output, shape index: {}]
  %s8 = sld [smem:[#allocation0]]
  $region61: #{tpu_custom_call.1} parent=0
    _
  %s10 = ssub.s32 1, %s8
  %s11 = scalar_select 0, %s10, %s8
  $region1: #{tpu_custom_call.1} parent=0
    #allocation3 [shape = 'u8[32768]{0}', space=vmem, size = 0x8000, scoped, tag = 'output window, operand 0']
    #allocation4 [shape = 's32[2]{0}', space=sflag, size = 0x8, scoped, tag = 'scoped memory for tpu_custom_call.1']
    %12 = vsyncpa [#allocation4], 0
    %s13 = scalar_lea.sflag [#allocation4], 1
    %14 = vsyncpa %s13, 0
    loop: start=0, step=1, limit=4
    $region2: #{tpu_custom_call.1} parent=1 // loop_pre_header
      _
    $region3: #{tpu_custom_call.1} parent=1 // loop_header
      %s16 = sphi 0, %s20
      %p17 = scmp.ge.s32.totalorder %s16, 4
      %s26 = sphi 0, %s28
      %s29 = sphi 0, %s26
      %s30 = sphi 0, %s29
      %s46 = sphi 0, %s30
      %s50 = sphi 0, %s50
      %s52 = sphi 0, %s50
      %s53 = sphi 0, %s52
      %s67 = sphi 0, %s53
      %s71 = sphi 0, %s71
      %s73 = sphi 0, %s71
      %s74 = sphi 0, %s73
      %s88 = sphi 0, %s74
      %s92 = sphi 0, %s92
      %s94 = sphi 0, %s92
      %s95 = sphi 0, %s94
      %s109 = sphi 0, %s95
      %s113 = sphi 0, %s113
      %s115 = sphi 0, %s113
      %s116 = sphi 0, %s115
      %s130 = sphi 0, %s116
      %s134 = sphi 0, %s134
      %s136 = sphi 0, %s134
      %s137 = sphi 0, %s136
      %s151 = sphi 0, %s137
      %s155 = sphi 0, %s155
      %s157 = sphi 0, %s155
      %s158 = sphi 0, %s157
      %s172 = sphi 0, %s158
      %s178 = sphi 0, %s180
      %s181 = sphi 0, %s178
      %s182 = sphi 0, %s181
      %s198 = sphi 0, %s182
    $region4: #{tpu_custom_call.1} parent=1 // loop_header_branch
      %19 = sbr.rel (%p17) target = $region8
    $region5: #{tpu_custom_call.1} parent=1 // loop_body
      %s21 = ssub.s32 %s16, 1
      %s22 = ssub.s32 %s16, 2
      %s23 = sadd.s32 %s16, 1
      %s24 = ssub.s32 %s16, %s23
      %p25 = scmp.eq.s32.totalorder %s24, 0
      %s27 = sadd.s32 %s26, 1
      %s28 = scalar_select %p25, %s26, %s27
      %p31 = pneg %p25
      %p32 = scmp.eq.s32.totalorder %s16, 1
      %p33 = por %p31, %p32
      %p34 = scmp.ne.s32.totalorder %s26, %s29
      %p35 = scmp.eq.s32.totalorder %s16, 0
      %p36 = por %p34, %p35
      %p37 = scmp.ne.s32.totalorder %s26, %s29
      %p38 = scmp.eq.s32.totalorder %s21, 1
      %p39 = por %p37, %p38
      %p40 = scmp.ne.s32.totalorder %s29, %s30
      %p41 = scmp.eq.s32.totalorder %s21, 0
      %p42 = por %p40, %p41
      %p43 = scmp.ne.s32.totalorder %s29, %s30
      %p44 = scmp.eq.s32.totalorder %s22, 1
      %p45 = por %p43, %p44
      %p47 = scmp.ne.s32.totalorder %s30, %s46
      %p48 = scmp.eq.s32.totalorder %s22, 0
      %p49 = por %p47, %p48
      %s51 = sadd.s32 %s50, 1
      %p54 = scmp.eq.s32.totalorder %s16, 1
      %p55 = scmp.ne.s32.totalorder %s50, %s52
      %p56 = scmp.eq.s32.totalorder %s16, 0
      %p57 = por %p55, %p56
      %p58 = scmp.ne.s32.totalorder %s50, %s52
      %p59 = scmp.eq.s32.totalorder %s21, 1
      %p60 = por %p58, %p59
      %p61 = scmp.ne.s32.totalorder %s52, %s53
      %p62 = scmp.eq.s32.totalorder %s21, 0
      %p63 = por %p61, %p62
      %p64 = scmp.ne.s32.totalorder %s52, %s53
      %p65 = scmp.eq.s32.totalorder %s22, 1
      %p66 = por %p64, %p65
      %p68 = scmp.ne.s32.totalorder %s53, %s67
      %p69 = scmp.eq.s32.totalorder %s22, 0
      %p70 = por %p68, %p69
      %s72 = sadd.s32 %s71, 1
      %p75 = scmp.eq.s32.totalorder %s16, 1
      %p76 = scmp.ne.s32.totalorder %s71, %s73
      %p77 = scmp.eq.s32.totalorder %s16, 0
      %p78 = por %p76, %p77
      %p79 = scmp.ne.s32.totalorder %s71, %s73
      %p80 = scmp.eq.s32.totalorder %s21, 1
      %p81 = por %p79, %p80
      %p82 = scmp.ne.s32.totalorder %s73, %s74
      %p83 = scmp.eq.s32.totalorder %s21, 0
      %p84 = por %p82, %p83
      %p85 = scmp.ne.s32.totalorder %s73, %s74
      %p86 = scmp.eq.s32.totalorder %s22, 1
      %p87 = por %p85, %p86
      %p89 = scmp.ne.s32.totalorder %s74, %s88
      %p90 = scmp.eq.s32.totalorder %s22, 0
      %p91 = por %p89, %p90
      %s93 = sadd.s32 %s92, 1
      %p96 = scmp.eq.s32.totalorder %s16, 1
      %p97 = scmp.ne.s32.totalorder %s92, %s94
      %p98 = scmp.eq.s32.totalorder %s16, 0
      %p99 = por %p97, %p98
      %p100 = scmp.ne.s32.totalorder %s92, %s94
      %p101 = scmp.eq.s32.totalorder %s21, 1
      %p102 = por %p100, %p101
      %p103 = scmp.ne.s32.totalorder %s94, %s95
      %p104 = scmp.eq.s32.totalorder %s21, 0
      %p105 = por %p103, %p104
      %p106 = scmp.ne.s32.totalorder %s94, %s95
      %p107 = scmp.eq.s32.totalorder %s22, 1
      %p108 = por %p106, %p107
      %p110 = scmp.ne.s32.totalorder %s95, %s109
      %p111 = scmp.eq.s32.totalorder %s22, 0
      %p112 = por %p110, %p111
      %s114 = sadd.s32 %s113, 1
      %p117 = scmp.eq.s32.totalorder %s16, 1
      %p118 = scmp.ne.s32.totalorder %s113, %s115
      %p119 = scmp.eq.s32.totalorder %s16, 0
      %p120 = por %p118, %p119
      %p121 = scmp.ne.s32.totalorder %s113, %s115
      %p122 = scmp.eq.s32.totalorder %s21, 1
      %p123 = por %p121, %p122
      %p124 = scmp.ne.s32.totalorder %s115, %s116
      %p125 = scmp.eq.s32.totalorder %s21, 0
      %p126 = por %p124, %p125
      %p127 = scmp.ne.s32.totalorder %s115, %s116
      %p128 = scmp.eq.s32.totalorder %s22, 1
      %p129 = por %p127, %p128
      %p131 = scmp.ne.s32.totalorder %s116, %s130
      %p132 = scmp.eq.s32.totalorder %s22, 0
      %p133 = por %p131, %p132
      %s135 = sadd.s32 %s134, 1
      %p138 = scmp.eq.s32.totalorder %s16, 1
      %p139 = scmp.ne.s32.totalorder %s134, %s136
      %p140 = scmp.eq.s32.totalorder %s16, 0
      %p141 = por %p139, %p140
      %p142 = scmp.ne.s32.totalorder %s134, %s136
      %p143 = scmp.eq.s32.totalorder %s21, 1
      %p144 = por %p142, %p143
      %p145 = scmp.ne.s32.totalorder %s136, %s137
      %p146 = scmp.eq.s32.totalorder %s21, 0
      %p147 = por %p145, %p146
      %p148 = scmp.ne.s32.totalorder %s136, %s137
      %p149 = scmp.eq.s32.totalorder %s22, 1
      %p150 = por %p148, %p149
      %p152 = scmp.ne.s32.totalorder %s137, %s151
      %p153 = scmp.eq.s32.totalorder %s22, 0
      %p154 = por %p152, %p153
      %s156 = sadd.s32 %s155, 1
      %p159 = scmp.eq.s32.totalorder %s16, 1
      %p160 = scmp.ne.s32.totalorder %s155, %s157
      %p161 = scmp.eq.s32.totalorder %s16, 0
      %p162 = por %p160, %p161
      %p163 = scmp.ne.s32.totalorder %s155, %s157
      %p164 = scmp.eq.s32.totalorder %s21, 1
      %p165 = por %p163, %p164
      %p166 = scmp.ne.s32.totalorder %s157, %s158
      %p167 = scmp.eq.s32.totalorder %s21, 0
      %p168 = por %p166, %p167
      %p169 = scmp.ne.s32.totalorder %s157, %s158
      %p170 = scmp.eq.s32.totalorder %s22, 1
      %p171 = por %p169, %p170
      %p173 = scmp.ne.s32.totalorder %s158, %s172
      %p174 = scmp.eq.s32.totalorder %s22, 0
      %p175 = por %p173, %p174
      %s176 = ssub.s32 %s16, %s23
      %p177 = scmp.eq.s32.totalorder %s176, 0
      %s179 = sadd.s32 %s178, 1
      %s180 = scalar_select %p177, %s178, %s179
      %p183 = pneg %p177
      %p184 = scmp.eq.s32.totalorder %s16, 1
      %p185 = por %p183, %p184
      %p186 = scmp.ne.s32.totalorder %s178, %s181
      %p187 = scmp.eq.s32.totalorder %s16, 0
      %p188 = por %p186, %p187
      %p189 = scmp.ne.s32.totalorder %s178, %s181
      %p190 = scmp.eq.s32.totalorder %s21, 1
      %p191 = por %p189, %p190
      %p192 = scmp.ne.s32.totalorder %s181, %s182
      %p193 = scmp.eq.s32.totalorder %s21, 0
      %p194 = por %p192, %p193
      %p195 = scmp.ne.s32.totalorder %s181, %s182
      %p196 = scmp.eq.s32.totalorder %s22, 1
      %p197 = por %p195, %p196
      %p199 = scmp.ne.s32.totalorder %s182, %s198
      %p200 = scmp.eq.s32.totalorder %s22, 0
      %p201 = por %p199, %p200
      %p202 = scmp.le.s32.totalorder 1, %s16
      %p203 = scmp.lt.s32.totalorder %s16, 3
      %p204 = pnand %p202, %p203
      %p205 = pneg %p204
      // Predicated region
      $region9: #{tpu_custom_call.1} parent=5 // pred_check
        _
      $region10: #{tpu_custom_call.1} parent=5 // pred_check_branch
        %207 = sbr.rel (%p204) target = $region12
      $region11: #{tpu_custom_call.1} parent=5 // pred_region
        %s208 = ssub.s32 %s16, 1
        // Predicated region
        $region13: #{tpu_custom_call.1} parent=11 // pred_check
          %p209 = pneg %p63
        $region14: #{tpu_custom_call.1} parent=11 // pred_check_branch
          %211 = sbr.rel (%p209) target = $region16
        $region15: #{tpu_custom_call.1} parent=11 // pred_region
          _
        $region16: #{tpu_custom_call.1} parent=11 // pred_fallthru
          _
        // Predicated region
        $region17: #{tpu_custom_call.1} parent=11 // pred_check
          %p212 = pneg %p84
        $region18: #{tpu_custom_call.1} parent=11 // pred_check_branch
          %214 = sbr.rel (%p212) target = $region20
        $region19: #{tpu_custom_call.1} parent=11 // pred_region
          _
        $region20: #{tpu_custom_call.1} parent=11 // pred_fallthru
          _
        // Predicated region
        $region21: #{tpu_custom_call.1} parent=11 // pred_check
          %p215 = pneg %p105
        $region22: #{tpu_custom_call.1} parent=11 // pred_check_branch
          %217 = sbr.rel (%p215) target = $region24
        $region23: #{tpu_custom_call.1} parent=11 // pred_region
          _
        $region24: #{tpu_custom_call.1} parent=11 // pred_fallthru
          _
        // Predicated region
        $region25: #{tpu_custom_call.1} parent=11 // pred_check
          %p218 = pneg %p126
        $region26: #{tpu_custom_call.1} parent=11 // pred_check_branch
          %220 = sbr.rel (%p218) target = $region28
        $region27: #{tpu_custom_call.1} parent=11 // pred_region
          _
        $region28: #{tpu_custom_call.1} parent=11 // pred_fallthru
          _
        // Predicated region
        $region29: #{tpu_custom_call.1} parent=11 // pred_check
          %p221 = pneg %p147
        $region30: #{tpu_custom_call.1} parent=11 // pred_check_branch
          %223 = sbr.rel (%p221) target = $region32
        $region31: #{tpu_custom_call.1} parent=11 // pred_region
          _
        $region32: #{tpu_custom_call.1} parent=11 // pred_fallthru
          _
        // Predicated region
        $region33: #{tpu_custom_call.1} parent=11 // pred_check
          %p224 = pneg %p168
        $region34: #{tpu_custom_call.1} parent=11 // pred_check_branch
          %226 = sbr.rel (%p224) target = $region36
        $region35: #{tpu_custom_call.1} parent=11 // pred_region
          _
        $region36: #{tpu_custom_call.1} parent=11 // pred_fallthru
          _
      $region12: #{tpu_custom_call.1} parent=5 // pred_fallthru
        _
      %p227 = scmp.lt.s32.totalorder %s16, 2
      // Predicated region
      $region37: #{tpu_custom_call.1} parent=5 // pred_check
        %p228 = pneg %p227
      $region38: #{tpu_custom_call.1} parent=5 // pred_check_branch
        %230 = sbr.rel (%p228) target = $region40
      $region39: #{tpu_custom_call.1} parent=5 // pred_region
        // Predicated region
        $region41: #{tpu_custom_call.1} parent=39 // pred_check
          %p231 = pneg %p36
        $region42: #{tpu_custom_call.1} parent=39 // pred_check_branch
          %233 = sbr.rel (%p231) target = $region44
        $region43: #{tpu_custom_call.1} parent=39 // pred_region
          %p234 = scmp.lt.s32.totalorder %s16, 1
          %s235 = scalar_select %p234, %s16, 1
          %s236 = smul.addr %s235, 4
          %s237 = smul.addr %s236, 8
          %s238 = scalar_lea.vmem %s0, %s237
        $region44: #{tpu_custom_call.1} parent=39 // pred_fallthru
          _
      $region40: #{tpu_custom_call.1} parent=5 // pred_fallthru
        _
      %p239 = scmp.le.s32.totalorder 1, %s16
      %p240 = scmp.lt.s32.totalorder %s16, 3
      %p241 = pnand %p239, %p240
      %p242 = pneg %p241
      // Predicated region
      $region45: #{tpu_custom_call.1} parent=5 // pred_check
        _
      $region46: #{tpu_custom_call.1} parent=5 // pred_check_branch
        %244 = sbr.rel (%p241) target = $region48
      $region47: #{tpu_custom_call.1} parent=5 // pred_region
        %s245 = ssub.s32 %s16, 1
        %p246 = scmp.lt.s32.totalorder %s21, 1
        %s247 = scalar_select %p246, %s21, 1
        %s248 = smul.addr %s247, 4
        %s249 = smul.addr %s248, 8
        %s250 = scalar_lea.vmem %s0, %s249
        %p251 = pneg %p42
        %p252 = pneg %p39
        %p253 = pneg %p63
        %p254 = pneg %p60
        %p255 = pneg %p84
        %p256 = pneg %p81
        %p257 = pneg %p105
        %p258 = pneg %p102
        %p259 = pneg %p126
        %p260 = pneg %p123
        %p261 = pneg %p147
        %p262 = pneg %p144
        %p263 = pneg %p168
        %p264 = pneg %p165
        %p265 = pneg %p194
        %p266 = pneg %p191
        %s267 = sand.u32 %s181, 1
        %s268 = scalar_lea.sflag [#allocation4], %s267
        %s269 = sand.u32 %s181, 1
        %s270 = smul.addr %s269, 32
        %s271 = scalar_lea.vmem [#allocation3], %s270
        %p272 = scmp.lt.s32.totalorder %s21, 1
        %s273 = scalar_select %p272, %s21, 1
        %s274 = smul.addr %s273, 4
        %s275 = smul.addr %s274, 8
        %s276 = scalar_lea.vmem %s0, %s275
        %v278 = vld [vmem:[%s276] sm:$0xff]
        %v279 = vld [vmem:[%s276 + $0x8] sm:$0xff]
        %v280 = vld [vmem:[%s276 + $0x10] sm:$0xff]
        %v281 = vld [vmem:[%s276 + $0x18] sm:$0xff]
        %v282 = vpack.c.bf16 %v280, %v278
        %v283 = vpack.c.bf16 %v281, %v279
        %v284 = vld [vmem:[%s1] sm:$0xf]
        %v285 = vld [vmem:[%s1 + $0x4] sm:$0xf]
        %v286 = vld [vmem:[%s1 + $0x8] sm:$0xf]
        %v287 = vld [vmem:[%s1 + $0xc] sm:$0xf]
        %v288 = vld [vmem:[%s1 + $0x10] sm:$0xf]
        %v289 = vld [vmem:[%s1 + $0x14] sm:$0xf]
        %v290 = vld [vmem:[%s1 + $0x18] sm:$0xf]
        %v291 = vld [vmem:[%s1 + $0x1c] sm:$0xf]
        %v292 = vld [vmem:[%s1 + $0x20] sm:$0xf]
        %v293 = vld [vmem:[%s1 + $0x24] sm:$0xf]
        %v294 = vld [vmem:[%s1 + $0x28] sm:$0xf]
        %v295 = vld [vmem:[%s1 + $0x2c] sm:$0xf]
        %v296 = vld [vmem:[%s1 + $0x30] sm:$0xf]
        %v297 = vld [vmem:[%s1 + $0x34] sm:$0xf]
        %v298 = vld [vmem:[%s1 + $0x38] sm:$0xf]
        %v299 = vld [vmem:[%s1 + $0x3c] sm:$0xf]
        %v300 = vld [vmem:[%s1 + $0x40] sm:$0xf]
        %v301 = vld [vmem:[%s1 + $0x44] sm:$0xf]
        %v302 = vld [vmem:[%s1 + $0x48] sm:$0xf]
        %v303 = vld [vmem:[%s1 + $0x4c] sm:$0xf]
        %v304 = vld [vmem:[%s1 + $0x50] sm:$0xf]
        %v305 = vld [vmem:[%s1 + $0x54] sm:$0xf]
        %v306 = vld [vmem:[%s1 + $0x58] sm:$0xf]
        %v307 = vld [vmem:[%s1 + $0x5c] sm:$0xf]
        %v308 = vld [vmem:[%s1 + $0x60] sm:$0xf]
        %v309 = vld [vmem:[%s1 + $0x64] sm:$0xf]
        %v310 = vld [vmem:[%s1 + $0x68] sm:$0xf]
        %v311 = vld [vmem:[%s1 + $0x6c] sm:$0xf]
        %v312 = vld [vmem:[%s1 + $0x70] sm:$0xf]
        %v313 = vld [vmem:[%s1 + $0x74] sm:$0xf]
        %v314 = vld [vmem:[%s1 + $0x78] sm:$0xf]
        %v315 = vld [vmem:[%s1 + $0x7c] sm:$0xf]
        %v316 = vld [vmem:[%s2] sm:$0x1]
        %v318 = vperm.slane %v316, 0
        %v352 = vunpack.c.l.b16 %v284
        %v353 = vunpack.c.l.b16 %v285
        %v354 = vunpack.c.l.b16 %v286
        %v355 = vunpack.c.l.b16 %v287
        %v356 = vunpack.c.l.b16 %v288
        %v357 = vunpack.c.l.b16 %v289
        %v358 = vunpack.c.l.b16 %v290
        %v359 = vunpack.c.l.b16 %v291
        %v360 = vunpack.c.l.b16 %v292
        %v361 = vunpack.c.l.b16 %v293
        %v362 = vunpack.c.l.b16 %v294
        %v363 = vunpack.c.l.b16 %v295
        %v364 = vunpack.c.l.b16 %v296
        %v365 = vunpack.c.l.b16 %v297
        %v366 = vunpack.c.l.b16 %v298
        %v367 = vunpack.c.l.b16 %v299
        %v368 = vunpack.c.l.b16 %v300
        %v369 = vunpack.c.l.b16 %v301
        %v370 = vunpack.c.l.b16 %v302
        %v371 = vunpack.c.l.b16 %v303
        %v372 = vunpack.c.l.b16 %v304
        %v373 = vunpack.c.l.b16 %v305
        %v374 = vunpack.c.l.b16 %v306
        %v375 = vunpack.c.l.b16 %v307
        %v376 = vunpack.c.l.b16 %v308
        %v377 = vunpack.c.l.b16 %v309
        %v378 = vunpack.c.l.b16 %v310
        %v379 = vunpack.c.l.b16 %v311
        %v380 = vunpack.c.l.b16 %v312
        %v381 = vunpack.c.l.b16 %v313
        %v382 = vunpack.c.l.b16 %v314
        %v383 = vunpack.c.l.b16 %v315
        %v384 = vpack.c.b16 %v353, %v352
        %v385 = vpack.c.b16 %v355, %v354
        %v386 = vpack.c.b16 %v357, %v356
        %v387 = vpack.c.b16 %v359, %v358
        %v388 = vpack.c.b16 %v361, %v360
        %v389 = vpack.c.b16 %v363, %v362
        %v390 = vpack.c.b16 %v365, %v364
        %v391 = vpack.c.b16 %v367, %v366
        %v392 = vpack.c.b16 %v369, %v368
        %v393 = vpack.c.b16 %v371, %v370
        %v394 = vpack.c.b16 %v373, %v372
        %v395 = vpack.c.b16 %v375, %v374
        %v396 = vpack.c.b16 %v377, %v376
        %v397 = vpack.c.b16 %v379, %v378
        %v398 = vpack.c.b16 %v381, %v380
        %v399 = vpack.c.b16 %v383, %v382
        %416 = vmatpush.bf16.msra.mxu0 %v391
        %417 = vmatpush.bf16.msra.mxu0 %v390
        %418 = vmatpush.bf16.msra.mxu0 %v389
        %419 = vmatpush.bf16.msra.mxu0 %v388
        %420 = vmatpush.bf16.msra.mxu0 %v387
        %421 = vmatpush.bf16.msra.mxu0 %v386
        %422 = vmatpush.bf16.msra.mxu0 %v385
        %423 = vmatpush.bf16.msra.mxu0 %v384
        %424 = vmatmul.bf16.gmra.mxu0 %v282
        %v425 = vpop.f32.mrf.mxu0
        %v426 = vadd.f32 %v318, %v425
        %v427 = vpop.f32.mrf.mxu0
        %v428 = vadd.f32 %v318, %v427
        %429 = vdwg.mxu0
        %430 = vmatpush.bf16.msra.mxu0 %v399
        %431 = vmatpush.bf16.msra.mxu0 %v398
        %432 = vmatpush.bf16.msra.mxu0 %v397
        %433 = vmatpush.bf16.msra.mxu0 %v396
        %434 = vmatpush.bf16.msra.mxu0 %v395
        %435 = vmatpush.bf16.msra.mxu0 %v394
        %436 = vmatpush.bf16.msra.mxu0 %v393
        %437 = vmatpush.bf16.msra.mxu0 %v392
        %438 = vmatmul.bf16.gmra.mxu0 %v283
        %v439 = vpop.f32.mrf.mxu0
        %v440 = vadd.f32 %v426, %v439
        %v441 = vpop.f32.mrf.mxu0
        %v442 = vadd.f32 %v428, %v441
        %443 = vdwg.mxu0
        %v444 = vmax.f32 %v440, 0.0
        %v445 = vmax.f32 %v442, 0.0
        %vm446 = vcmask 581632
        %447 = vst.msk [vmem:[#allocation2] sm:$0x1] %vm446, 0.0
        %448 = vst.msk [vmem:[#allocation2 + $0x11] sm:$0x1] %vm446, 0.0
        %vm449 = vcmask 31744
        %450 = vst.msk [vmem:[#allocation2] sm:$0xff] %vm449, 0.0
        %451 = vst.msk [vmem:[#allocation2 + $0x8] sm:$0xff] %vm449, 0.0
        %vm452 = vcmask 25600
        %453 = vst.msk [vmem:[#allocation2 + $0x10] sm:$0x3] %vm452, 0.0
        %vm454 = vcmask 589344
        %455 = vst.msk [vmem:[#allocation2] sm:$0xff] %vm454, 0.0
        %456 = vst.msk [vmem:[#allocation2 + $0x8] sm:$0xff] %vm454, 0.0
        %vm457 = vcmask 583200
        %458 = vst.msk [vmem:[#allocation2 + $0x10] sm:$0x3] %vm457, 0.0
        %461 = vrot.lane.b32.xlu0 %v444, 4
        %v462 = vpop.permute.xlu0 %461
        %463 = vrot.lane.b32.xlu0 %v445, 4
        %v464 = vpop.permute.xlu0 %463
        %vm467 = vcmask 556064
        %468 = vst.msk [vmem:[#allocation2 + $0x1] sm:$0xff] %vm467, %v462
        %469 = vst.msk [vmem:[#allocation2 + $0x9] sm:$0xff] %vm467, %v464
        %v470 = vld [vmem:[#allocation2] sm:$0xff]
        %v471 = vld [vmem:[#allocation2 + $0x8] sm:$0xff]
        %v472 = vpack.c.bf16 %v471, %v470
        %v473 = vld [vmem:[%s3] sm:$0xf]
        %v474 = vld [vmem:[%s3 + $0x4] sm:$0xf]
        %v475 = vld [vmem:[%s3 + $0x8] sm:$0xf]
        %v476 = vld [vmem:[%s3 + $0xc] sm:$0xf]
        %v477 = vld [vmem:[%s3 + $0x10] sm:$0xf]
        %v478 = vld [vmem:[%s3 + $0x14] sm:$0xf]
        %v479 = vld [vmem:[%s3 + $0x18] sm:$0xf]
        %v480 = vld [vmem:[%s3 + $0x1c] sm:$0xf]
        %v481 = vld [vmem:[%s3 + $0x20] sm:$0xf]
        %v482 = vld [vmem:[#allocation2 + $0x1] sm:$0xff]
        %v483 = vld [vmem:[#allocation2 + $0x9] sm:$0xff]
        %v484 = vpack.c.bf16 %v483, %v482
        %s485 = scalar_lea.vmem %s3, 36
        %v486 = vld [vmem:[%s485] sm:$0xf]
        %v487 = vld [vmem:[%s485 + $0x4] sm:$0xf]
        %v488 = vld [vmem:[%s485 + $0x8] sm:$0xf]
        %v489 = vld [vmem:[%s485 + $0xc] sm:$0xf]
        %v490 = vld [vmem:[%s485 + $0x10] sm:$0xf]
        %v491 = vld [vmem:[%s485 + $0x14] sm:$0xf]
        %v492 = vld [vmem:[%s485 + $0x18] sm:$0xf]
        %v493 = vld [vmem:[%s485 + $0x1c] sm:$0xf]
        %v494 = vld [vmem:[%s485 + $0x20] sm:$0xf]
        %v504 = vunpack.c.l.b16 %v486
        %v505 = vunpack.c.l.b16 %v487
        %v506 = vunpack.c.l.b16 %v488
        %v507 = vunpack.c.l.b16 %v489
        %v508 = vunpack.c.l.b16 %v490
        %v509 = vunpack.c.l.b16 %v491
        %v510 = vunpack.c.l.b16 %v492
        %v511 = vunpack.c.l.b16 %v493
        %v512 = vunpack.c.l.b16 %v494
        %v513 = vpack.c.b16 %v505, %v504
        %v514 = vpack.c.b16 %v507, %v506
        %v515 = vpack.c.b16 %v509, %v508
        %v516 = vpack.c.b16 %v511, %v510
        %v517 = vpack.c.b16 %v512, %v512
        %vm522 = vcmask 588800
        %v524 = vsel %vm522, %v484, 0
        %vm526 = vcmask 1043456
        %v528 = vsel %vm526, %v517, 0
        %530 = vmatpush.bf16.msra.mxu0 0
        %531 = vmatpush.bf16.msra.mxu0 0
        %532 = vmatpush.bf16.msra.mxu0 0
        %533 = vmatpush.bf16.msra.mxu0 %v528
        %534 = vmatpush.bf16.msra.mxu0 %v516
        %535 = vmatpush.bf16.msra.mxu0 %v515
        %536 = vmatpush.bf16.msra.mxu0 %v514
        %537 = vmatpush.bf16.msra.mxu0 %v513
        %538 = vmatmul.bf16.gmra.mxu0 %v524
        %v539 = vpop.f32.mrf.mxu0
        %v540 = vadd.f32 0.0, %v539
        %v541 = vpop.f32.mrf.mxu0
        %v542 = vadd.f32 0.0, %v541
        %543 = vdwg.mxu0
        %v553 = vunpack.c.l.b16 %v473
        %v554 = vunpack.c.l.b16 %v474
        %v555 = vunpack.c.l.b16 %v475
        %v556 = vunpack.c.l.b16 %v476
        %v557 = vunpack.c.l.b16 %v477
        %v558 = vunpack.c.l.b16 %v478
        %v559 = vunpack.c.l.b16 %v479
        %v560 = vunpack.c.l.b16 %v480
        %v561 = vunpack.c.l.b16 %v481
        %v562 = vpack.c.b16 %v554, %v553
        %v563 = vpack.c.b16 %v556, %v555
        %v564 = vpack.c.b16 %v558, %v557
        %v565 = vpack.c.b16 %v560, %v559
        %v566 = vpack.c.b16 %v561, %v561
        %v572 = vsel %vm522, %v472, 0
        %v575 = vsel %vm526, %v566, 0
        %577 = vmatpush.bf16.msra.mxu0 0
        %578 = vmatpush.bf16.msra.mxu0 0
        %579 = vmatpush.bf16.msra.mxu0 0
        %580 = vmatpush.bf16.msra.mxu0 %v575
        %581 = vmatpush.bf16.msra.mxu0 %v565
        %582 = vmatpush.bf16.msra.mxu0 %v564
        %583 = vmatpush.bf16.msra.mxu0 %v563
        %584 = vmatpush.bf16.msra.mxu0 %v562
        %585 = vmatmul.bf16.gmra.mxu0 %v572
        %v586 = vpop.f32.mrf.mxu0
        %v587 = vadd.f32 %v540, %v586
        %v588 = vpop.f32.mrf.mxu0
        %v589 = vadd.f32 %v542, %v588
        %590 = vdwg.mxu0
        %v591 = vld [vmem:[#allocation2 + $0x2] sm:$0xff]
        %v592 = vld [vmem:[#allocation2 + $0xa] sm:$0xff]
        %v593 = vpack.c.bf16 %v592, %v591
        %s594 = scalar_lea.vmem %s3, 72
        %v595 = vld [vmem:[%s594] sm:$0xf]
        %v596 = vld [vmem:[%s594 + $0x4] sm:$0xf]
        %v597 = vld [vmem:[%s594 + $0x8] sm:$0xf]
        %v598 = vld [vmem:[%s594 + $0xc] sm:$0xf]
        %v599 = vld [vmem:[%s594 + $0x10] sm:$0xf]
        %v600 = vld [vmem:[%s594 + $0x14] sm:$0xf]
        %v601 = vld [vmem:[%s594 + $0x18] sm:$0xf]
        %v602 = vld [vmem:[%s594 + $0x1c] sm:$0xf]
        %v603 = vld [vmem:[%s594 + $0x20] sm:$0xf]
        %v613 = vunpack.c.l.b16 %v595
        %v614 = vunpack.c.l.b16 %v596
        %v615 = vunpack.c.l.b16 %v597
        %v616 = vunpack.c.l.b16 %v598
        %v617 = vunpack.c.l.b16 %v599
        %v618 = vunpack.c.l.b16 %v600
        %v619 = vunpack.c.l.b16 %v601
        %v620 = vunpack.c.l.b16 %v602
        %v621 = vunpack.c.l.b16 %v603
        %v622 = vpack.c.b16 %v614, %v613
        %v623 = vpack.c.b16 %v616, %v615
        %v624 = vpack.c.b16 %v618, %v617
        %v625 = vpack.c.b16 %v620, %v619
        %v626 = vpack.c.b16 %v621, %v621
        %v632 = vsel %vm522, %v593, 0
        %v635 = vsel %vm526, %v626, 0
        %637 = vmatpush.bf16.msra.mxu0 0
        %638 = vmatpush.bf16.msra.mxu0 0
        %639 = vmatpush.bf16.msra.mxu0 0
        %640 = vmatpush.bf16.msra.mxu0 %v635
        %641 = vmatpush.bf16.msra.mxu0 %v625
        %642 = vmatpush.bf16.msra.mxu0 %v624
        %643 = vmatpush.bf16.msra.mxu0 %v623
        %644 = vmatpush.bf16.msra.mxu0 %v622
        %645 = vmatmul.bf16.gmra.mxu0 %v632
        %v646 = vpop.f32.mrf.mxu0
        %v647 = vadd.f32 0.0, %v646
        %v648 = vpop.f32.mrf.mxu0
        %v649 = vadd.f32 0.0, %v648
        %650 = vdwg.mxu0
        %v651 = vadd.f32 %v587, %v647
        %v652 = vadd.f32 %v589, %v649
        %v653 = vld [vmem:[%s4] sm:$0x1]
        %v655 = vperm.slane %v653, 0
        %v657 = vadd.f32 %v651, %v655
        %v658 = vadd.f32 %v652, %v655
        %v659 = vmax.f32 %v657, 0.0
        %v660 = vmax.f32 %v658, 0.0
        %v661 = vpack.c.bf16 %v660, %v659
        %v662 = vld [vmem:[%s5] sm:$0xff]
        %v663 = vld [vmem:[%s5 + $0x8] sm:$0xff]
        %v664 = vld [vmem:[%s5 + $0x10] sm:$0xff]
        %v665 = vld [vmem:[%s5 + $0x18] sm:$0xff]
        %v666 = vld [vmem:[%s5 + $0x20] sm:$0xff]
        %v667 = vld [vmem:[%s5 + $0x28] sm:$0xff]
        %v668 = vld [vmem:[%s5 + $0x30] sm:$0xff]
        %v669 = vld [vmem:[%s5 + $0x38] sm:$0xff]
        %v670 = vld [vmem:[%s6] sm:$0x3]
        %v672 = vperm.slane %v670, 0
        %v673 = vperm.slane %v670, 1
        %v684 = vunpack.c.l.b16 %v662
        %v685 = vunpack.c.h.b16 %v662
        %v686 = vunpack.c.l.b16 %v663
        %v687 = vunpack.c.h.b16 %v663
        %v688 = vunpack.c.l.b16 %v664
        %v689 = vunpack.c.h.b16 %v664
        %v690 = vunpack.c.l.b16 %v665
        %v691 = vunpack.c.h.b16 %v665
        %v692 = vunpack.c.l.b16 %v666
        %v693 = vunpack.c.h.b16 %v666
        %v694 = vunpack.c.l.b16 %v667
        %v695 = vunpack.c.h.b16 %v667
        %v696 = vunpack.c.l.b16 %v668
        %v697 = vunpack.c.h.b16 %v668
        %v698 = vunpack.c.l.b16 %v669
        %v699 = vunpack.c.h.b16 %v669
        %v700 = vpack.c.b16 %v686, %v684
        %v701 = vpack.c.b16 %v687, %v685
        %v702 = vpack.c.b16 %v690, %v688
        %v703 = vpack.c.b16 %v691, %v689
        %v704 = vpack.c.b16 %v694, %v692
        %v705 = vpack.c.b16 %v695, %v693
        %v706 = vpack.c.b16 %v698, %v696
        %v707 = vpack.c.b16 %v699, %v697
        %vm716 = vcmask 523264
        %v718 = vsel %vm716, %v661, 0
        %720 = vmatpush.bf16.msra.mxu0 0
        %721 = vmatpush.bf16.msra.mxu0 0
        %722 = vmatpush.bf16.msra.mxu0 0
        %723 = vmatpush.bf16.msra.mxu0 0
        %724 = vmatpush.bf16.msra.mxu0 %v706
        %725 = vmatpush.bf16.msra.mxu0 %v704
        %726 = vmatpush.bf16.msra.mxu0 %v702
        %727 = vmatpush.bf16.msra.mxu0 %v700
        %728 = vmatmul.bf16.gmra.mxu0 %v718
        %v729 = vpop.f32.mrf.mxu0
        %v730 = vadd.f32 %v672, %v729
        %v731 = vpop.f32.mrf.mxu0
        %v732 = vadd.f32 %v672, %v731
        %733 = vdwg.mxu0
        %734 = vmatpush.bf16.msra.mxu0 0
        %735 = vmatpush.bf16.msra.mxu0 0
        %736 = vmatpush.bf16.msra.mxu0 0
        %737 = vmatpush.bf16.msra.mxu0 0
        %738 = vmatpush.bf16.msra.mxu0 %v707
        %739 = vmatpush.bf16.msra.mxu0 %v705
        %740 = vmatpush.bf16.msra.mxu0 %v703
        %741 = vmatpush.bf16.msra.mxu0 %v701
        %742 = vmatmul.bf16.gmra.mxu0 %v718
        %v743 = vpop.f32.mrf.mxu0
        %v744 = vadd.f32 %v673, %v743
        %v745 = vpop.f32.mrf.mxu0
        %v746 = vadd.f32 %v673, %v745
        %747 = vdwg.mxu0
        %v748 = vld [vmem:[%s276] sm:$0xff]
        %v749 = vld [vmem:[%s276 + $0x8] sm:$0xff]
        %v750 = vld [vmem:[%s276 + $0x10] sm:$0xff]
        %v751 = vld [vmem:[%s276 + $0x18] sm:$0xff]
        %v752 = vadd.f32 %v730, %v748
        %v753 = vadd.f32 %v744, %v749
        %v754 = vadd.f32 %v732, %v750
        %v755 = vadd.f32 %v746, %v751
        %v756 = vmax.f32 %v752, 0.0
        %v757 = vmax.f32 %v753, 0.0
        %v758 = vmax.f32 %v754, 0.0
        %v759 = vmax.f32 %v755, 0.0
        %760 = vst [vmem:[%s271] sm:$0xff] %v756
        %761 = vst [vmem:[%s271 + $0x8] sm:$0xff] %v757
        %762 = vst [vmem:[%s271 + $0x10] sm:$0xff] %v758
        %763 = vst [vmem:[%s271 + $0x18] sm:$0xff] %v759
        %s764 = sand.u32 %s181, 1
        %s765 = scalar_lea.sflag [#allocation4], %s764
        %s766 = sand.u32 %s181, 1
        %s767 = smul.addr %s766, 32
        %s768 = scalar_lea.vmem [#allocation3], %s767
        // Predicated region
        $region49: #{tpu_custom_call.1} parent=47 // pred_check
          %p769 = pneg %p191
        $region50: #{tpu_custom_call.1} parent=47 // pred_check_branch
          %771 = sbr.rel (%p769) target = $region52
        $region51: #{tpu_custom_call.1} parent=47 // pred_region
          %773 = vsyncadd %s765, 0
          %s774 = smul.addr %s21, 4
          %s775 = smul.addr %s774, 8
          %s776 = scalar_lea.hbm %s7, %s775
          %s777 = sshll.u32 %s768, 4
          %s778 = int_to_ptr.vmem [resolvable:$true] %s777
          %s779 = sshll.u32 %s776, 4
          %s780 = int_to_ptr.hbm [resolvable:$true] %s779
          %785 = dma.vmem_to_hbm [thread:$0]  %s778, 512, %s780, %s765, 256, 256, 16
        $region52: #{tpu_custom_call.1} parent=47 // pred_fallthru
          _
      $region48: #{tpu_custom_call.1} parent=5 // pred_fallthru
        _
      %p786 = scmp.le.s32.totalorder 2, %s16
      // Predicated region
      $region53: #{tpu_custom_call.1} parent=5 // pred_check
        %p787 = pneg %p786
      $region54: #{tpu_custom_call.1} parent=5 // pred_check_branch
        %789 = sbr.rel (%p787) target = $region56
      $region55: #{tpu_custom_call.1} parent=5 // pred_region
        %s790 = ssub.s32 %s16, 2
        // Predicated region
        $region57: #{tpu_custom_call.1} parent=55 // pred_check
          %p791 = pneg %p197
        $region58: #{tpu_custom_call.1} parent=55 // pred_check_branch
          %793 = sbr.rel (%p791) target = $region60
        $region59: #{tpu_custom_call.1} parent=55 // pred_region
          %s794 = sand.u32 %s182, 1
          %s795 = scalar_lea.sflag [#allocation4], %s794
          %s796 = sand.u32 %s182, 1
          %s797 = smul.addr %s796, 32
          %s798 = scalar_lea.vmem [#allocation3], %s797
          %800 = dma.done %s795, 512
        $region60: #{tpu_custom_call.1} parent=55 // pred_fallthru
          _
      $region56: #{tpu_custom_call.1} parent=5 // pred_fallthru
        _
    $region6: #{tpu_custom_call.1} parent=1 // loop_footer
      %s20 = sadd.s32 1, %s16
    $region7: #{tpu_custom_call.1} parent=1 // loop_footer_branch
      %15 = sbr.rel target = $region3
    $region8: #{tpu_custom_call.1} parent=1 // loop_exit
      _
    %801 = vsyncpa [#allocation4], 1
    %s802 = scalar_lea.sflag [#allocation4], 1
    %803 = vsyncpa %s802, 1

</llo_original>
